<compile_context>
chip_gen: v5e
topology: v5e:2x2
jax: 0.10.0
libtpu: 0.0.40
codegen_flags: <defaults>
</compile_context>

<pallas_src>
import functools

import jax
import jax.numpy as jnp
from jax.experimental import pallas as pl
from jax.experimental.pallas import tpu as pltpu


_ROW_CHUNK = 8  # rows per in-kernel sub-chunk on the k>1 extraction path


def _get_number_of_instances(k, n):
    # mirrors WeldonPool2dFunction.get_number_of_instances
    if k <= 0:
        return 0
    elif k < 1:
        return int(round(k * n))
    elif k > n:
        return int(n)
    else:
        return int(k)


def _extraction_steps(k, n):
    """Masked-extraction iterations needed for a k-extreme sum.

    0 means a loop-free path: k<=0, k==1, k>=n, or a single-reduce complement.
    """
    if k <= 0 or k >= n:
        return 0
    eff = min(k, n - k)  # complement trick for k > n//2
    return eff if eff > 1 else 0


def _extreme_k_sum(x, k, n, iota, largest):
    """Per-row sum of the k largest (largest=True) or smallest values.

    x: (rows, n) in compute dtype. iota: (rows, n) int32 (may be None when no
    extraction loop is required). Returns (rows, 1) float32.
    """
    if largest:
        reduce_fn = lambda a: jnp.max(a, axis=-1, keepdims=True)
        neutral = float("-inf")
    else:
        reduce_fn = lambda a: jnp.min(a, axis=-1, keepdims=True)
        neutral = float("inf")

    if k >= n:
        # top-n / bottom-n of n elements == sum of everything.
        return jnp.sum(x.astype(jnp.float32), axis=-1, keepdims=True)

    if k == 1:
        # Module default (kmax = kmin = 1): one cross-lane reduction, no masking.
        return reduce_fn(x).astype(jnp.float32)

    if k > n - k:
        # Complement trick: sum(top-k) = sum(all) - sum(bottom-(n-k)) (and vice
        # versa); halves the worst-case extraction count for large fractional k.
        total = jnp.sum(x.astype(jnp.float32), axis=-1, keepdims=True)
        return total - _extreme_k_sum(x, n - k, n, iota, not largest)

    # 2 <= k <= n//2: masked extraction, one extreme removed per step.
    def body(_, carry):
        work, s = carry
        m = reduce_fn(work)
        s = s + m.astype(jnp.float32)
        # Mask exactly one (the first) occurrence of the extreme value so ties
        # behave like torch.sort + narrow (sum over the same multiset).
        pos = jnp.where(work == m, iota, n)
        first = jnp.min(pos, axis=-1, keepdims=True)
        work = jnp.where(iota == first, jnp.asarray(neutral, work.dtype), work)
        return work, s

    steps = k - 1  # final extraction peeled below (no dead masking)
    unroll = True if steps <= 8 else 8  # partial unroll keeps LLO visibility
    s0 = jnp.zeros((x.shape[0], 1), jnp.float32)
    work, s = jax.lax.fori_loop(0, steps, body, (x, s0), unroll=unroll)
    return s + reduce_fn(work).astype(jnp.float32)


def _weldon_kernel(x_ref, o_ref, *, kmax, kmin, n, compute_dtype, row_chunk):
    # x_ref: (TR, n) tile of rows; o_ref: (TR, 1) pooled value per row.
    needs_loop = (_extraction_steps(kmax, n) > 0
                  or (kmin > 0 and _extraction_steps(kmin, n) > 0))

    def pooled(x, iota):
        x = x.astype(compute_dtype)
        out = _extreme_k_sum(x, kmax, n, iota, largest=True) / float(kmax)
        if kmin > 0:
            out = (out + _extreme_k_sum(x, kmin, n, iota, largest=False)
                   / float(kmin)) * 0.5
        return out

    if not needs_loop:
        # k in {1, n} (or a 1-step complement): whole-tile cross-lane
        # reductions only -- HBM-bandwidth-bound, no per-element temporaries.
        o_ref[...] = pooled(x_ref[...], None).astype(o_ref.dtype)
        return

    tr = x_ref.shape[0]
    # Hoisted full-shape iota: JAX does not CSE broadcast_in_dim, so a (1, n)
    # iota broadcast inside the extraction loop would be re-emitted every
    # iteration. Built once per tile at the sub-chunk shape.
    iota = jax.lax.broadcasted_iota(jnp.int32, (row_chunk, n), 1)

    # Small row sub-chunks keep the work/pos fori_loop carries vreg-resident
    # instead of dragging a (TR, n) carry through the vector-store slot.
    @pl.loop(0, tr // row_chunk)
    def _(r):
        r0 = pl.multiple_of(r * row_chunk, row_chunk)
        x = x_ref[pl.ds(r0, row_chunk), :]
        o_ref[pl.ds(r0, row_chunk), :] = pooled(x, iota).astype(o_ref.dtype)


def _vmem_capacity_bytes():
    try:
        return int(pltpu.get_tpu_info().vmem_capacity_bytes)
    except Exception:
        return 64 * 1024 * 1024  # conservative (v7x-sized) fallback


def _compute_dtype_for(x_dtype):
    if jnp.dtype(x_dtype) == jnp.dtype(jnp.bfloat16):
        kind = ""
        try:
            kind = jax.devices()[0].device_kind.lower()
        except Exception:
            pass
        # v5e has no native bf16 VPU: one upfront f32 cast beats per-op
        # widening inside the extraction loop. v6e/v7x keep bf16 (halves
        # vreg / VMEM traffic in the loop).
        if "v5 lite" in kind or "v5lite" in kind or "v5e" in kind:
            return jnp.float32
        return jnp.bfloat16
    return jnp.float32


def _select_tiling(bc, n, itemsize, needs_loop, row_chunk):
    """Pick the row tile TR and scoped vmem limit, generation aware."""
    vmem_cap = _vmem_capacity_bytes()
    if vmem_cap >= 96 * 1024 * 1024:        # v5e / v6e: 128 MiB physical VMEM
        vmem_limit = 64 * 1024 * 1024
        budget = 48 * 1024 * 1024
        tr_cap = 8192
    else:                                    # v7x: 64 MiB physical VMEM
        vmem_limit = 32 * 1024 * 1024
        budget = 20 * 1024 * 1024
        tr_cap = 2048

    if needs_loop:
        # Only the double-buffered input block scales with TR; the extraction
        # temporaries are (row_chunk, n)-sized and fixed (~8 f32 arrays).
        chunk_tmp = 8 * row_chunk * n * 4
        budget = max(budget - chunk_tmp, row_chunk * (2 * n * itemsize + 16))
        bytes_per_row = 2 * n * itemsize + 16
    else:
        # 2x double-buffered input block + one f32 reduce operand.
        chunk_tmp = 0
        bytes_per_row = n * (2 * itemsize + 4)

    tr = max(8, min(tr_cap, (budget // bytes_per_row) // 8 * 8))

    bc8 = -(-bc // 8) * 8
    if bc8 >= 32:
        # >=4 grid steps: each v7x TensorCore gets >=2 pipelined 'parallel'
        # steps (restores intra-core double-buffering); single-core chips keep
        # prefetch overlap too.
        tr = min(tr, max(8, (bc8 // 4) // 8 * 8))
    elif bc8 >= 16:
        tr = min(tr, max(8, (bc8 // 2) // 8 * 8))
    tr = min(tr, bc8)

    # Very large n at the minimum tile: raise the scoped limit toward physical
    # capacity instead of failing compile against the default limit.
    # TODO(synk): an n-chunked (spatial-tiled) fallback for huge H*W with k>1
    # (top-k across spatial tiles needs a merge step) is not implemented.
    est = tr * bytes_per_row + chunk_tmp + (1 << 20)
    if est > vmem_limit:
        vmem_limit = max(vmem_limit, min(int(vmem_cap * 0.9), est))
    return tr, vmem_limit


def weldon_pool2d(x, kmax=1, kmin=None):
    """WeldonPool2d forward. x: (B, C, H, W) -> (B, C)."""
    if kmin is None:
        kmin = kmax
    B, C, H, W = x.shape
    n = H * W
    km = _get_number_of_instances(kmax, n)
    kn = _get_number_of_instances(kmin, n)
    assert km > 0, "kmax must map to at least 1 instance"
    # NOTE: if 0 < kmin < 1 rounds to 0 instances the bottom-k branch is
    # skipped here (the PyTorch forward would divide by zero in that case).

    bc = B * C
    xf = x.reshape(bc, n)

    needs_loop = (_extraction_steps(km, n) > 0
                  or (kn > 0 and _extraction_steps(kn, n) > 0))
    row_chunk = _ROW_CHUNK
    tr, vmem_limit = _select_tiling(bc, n, x.dtype.itemsize, needs_loop, row_chunk)

    bc_pad = pl.cdiv(bc, tr) * tr
    if bc_pad != bc:
        # Pad rows so every grid step sees a full (tr, n) tile; padded rows'
        # outputs are sliced away below (rows are independent).
        xf = jnp.pad(xf, ((0, bc_pad - bc), (0, 0)))
    grid = (bc_pad // tr,)

    steps = max(_extraction_steps(km, n), 1)
    if kn > 0:
        steps += max(_extraction_steps(kn, n), 1)
    cost = pl.CostEstimate(
        flops=6 * steps * bc_pad * n,
        transcendentals=0,
        bytes_accessed=bc_pad * n * x.dtype.itemsize + bc_pad * x.dtype.itemsize,
    )

    out = pl.pallas_call(
        functools.partial(_weldon_kernel, kmax=km, kmin=kn, n=n,
                          compute_dtype=_compute_dtype_for(x.dtype),
                          row_chunk=row_chunk),
        out_shape=jax.ShapeDtypeStruct((bc_pad, 1), x.dtype),
        grid_spec=pltpu.PrefetchScalarGridSpec(
            num_scalar_prefetch=0,
            grid=grid,
            in_specs=[pl.BlockSpec((tr, n), lambda i: (i, 0))],
            out_specs=pl.BlockSpec((tr, 1), lambda i: (i, 0)),
        ),
        compiler_params=pltpu.CompilerParams(
            dimension_semantics=("parallel",),
            vmem_limit_bytes=int(vmem_limit),
        ),
        cost_estimate=cost,
    )(xf)
    return out[:bc, 0].reshape(B, C)


def _weldon_reference(x, kmax=1, kmin=None):
    # Pure-JAX reference mirroring the PyTorch forward.
    if kmin is None:
        kmin = kmax
    B, C, H, W = x.shape
    n = H * W
    km = _get_number_of_instances(kmax, n)
    kn = _get_number_of_instances(kmin, n)
    s = jnp.sort(x.reshape(B, C, n), axis=2)[:, :, ::-1]  # descending
    out = s[:, :, :km].sum(2) / km
    if kn > 0:
        out = (out + s[:, :, n - kn:].sum(2) / kn) / 2
    return out


# TODO(synk): only the forward pass is implemented; the autograd backward
# (scatter of grad to top-k / bottom-k indices) is not translated.
# TODO(synk): a lane-packed (transposed) layout for tiny n (<128) with k>1 is
# not implemented; the wrapper transpose would add a full HBM pass.

if __name__ == "__main__":
    key = jax.random.PRNGKey(0)

    # Module default: kmax=1, kmin=None (-> kmin = kmax = 1): HBM-bound path.
    B, C, H, W = 2, 4, 16, 16
    x = jax.random.normal(key, (B, C, H, W), dtype=jnp.float32)
    y = jax.block_until_ready(weldon_pool2d(x, kmax=1, kmin=None))
    y_ref = _weldon_reference(x, kmax=1, kmin=None)
    assert y.shape == (B, C)
    assert jnp.allclose(y, y_ref, atol=1e-5, rtol=1e-5), (y, y_ref)

    # Multi-instance case (kmax=3, kmin=2): exercises the sub-chunked
    # extraction loop with full unroll.
    y2 = jax.block_until_ready(weldon_pool2d(x, kmax=3, kmin=2))
    y2_ref = _weldon_reference(x, kmax=3, kmin=2)
    assert jnp.allclose(y2, y2_ref, atol=1e-5, rtol=1e-5), (y2, y2_ref)

    # Non-multiple-of-8 B*C + fractional k: exercises row padding, a multi-step
    # grid, and the k = round(kmax * n) path.
    key2 = jax.random.PRNGKey(1)
    x3 = jax.random.normal(key2, (3, 7, 8, 8), dtype=jnp.float32)
    y3 = jax.block_until_ready(weldon_pool2d(x3, kmax=0.1, kmin=0.05))
    y3_ref = _weldon_reference(x3, kmax=0.1, kmin=0.05)
    assert y3.shape == (3, 7)
    assert jnp.allclose(y3, y3_ref, atol=1e-5, rtol=1e-5), (y3, y3_ref)

    # Large fractional kmax: exercises the complement trick, partial (8-way)
    # unroll, the >=4-grid-step cap (B*C = 64), and non-128-multiple n = 144.
    key3 = jax.random.PRNGKey(2)
    x4 = jax.random.normal(key3, (4, 16, 12, 12), dtype=jnp.float32)
    y4 = jax.block_until_ready(weldon_pool2d(x4, kmax=0.9, kmin=0.25))
    y4_ref = _weldon_reference(x4, kmax=0.9, kmin=0.25)
    assert y4.shape == (4, 16)
    assert jnp.allclose(y4, y4_ref, atol=1e-4, rtol=1e-4), (y4, y4_ref)

    print("KERNEL_OK")
</pallas_src>

<mosaic_0001>
module attributes {stable_mosaic.version = 11 : i64} {
  func.func @_weldon_kernel(%arg0: i32, %arg1: memref<8x256xf32, #tpu.memory_space<vmem>>, %arg2: memref<8x1xf32, #tpu.memory_space<vmem>>) attributes {dimension_semantics = [#tpu.dimension_semantics<parallel>], iteration_bounds = array<i64: 1>, scalar_prefetch = 0 : i64, scratch_operands = 0 : i64, tpu.core_type = #tpu.core_type<tc>, window_params = [{transform_indices = @transform_0, window_bounds = array<i64: 8, 256>}, {transform_indices = @transform_1, window_bounds = array<i64: 8, 1>}]} {
    %c0 = arith.constant 0 : index
    %c0_0 = arith.constant 0 : index
    %0 = vector.load %arg1[%c0, %c0_0] : memref<8x256xf32, #tpu.memory_space<vmem>>, vector<8x256xf32>
    %cst = arith.constant dense<0xFF800000> : vector<8xf32>
    %1 = vector.multi_reduction <maximumf>, %0, %cst [1] : vector<8x256xf32> to vector<8xf32>
    %2 = vector.shape_cast %1 : vector<8xf32> to vector<8x1xf32>
    %cst_1 = arith.constant 1.000000e+00 : f32
    %3 = vector.broadcast %cst_1 : f32 to vector<8x1xf32>
    %4 = arith.divf %2, %3 : vector<8x1xf32>
    %cst_2 = arith.constant dense<0x7F800000> : vector<8xf32>
    %5 = vector.multi_reduction <minimumf>, %0, %cst_2 [1] : vector<8x256xf32> to vector<8xf32>
    %6 = vector.shape_cast %5 : vector<8xf32> to vector<8x1xf32>
    %cst_3 = arith.constant 1.000000e+00 : f32
    %7 = vector.broadcast %cst_3 : f32 to vector<8x1xf32>
    %8 = arith.divf %6, %7 : vector<8x1xf32>
    %9 = arith.addf %4, %8 : vector<8x1xf32>
    %cst_4 = arith.constant 5.000000e-01 : f32
    %10 = vector.broadcast %cst_4 : f32 to vector<8x1xf32>
    %11 = arith.mulf %9, %10 : vector<8x1xf32>
    %c0_5 = arith.constant 0 : index
    %c0_6 = arith.constant 0 : index
    %12 = vector.load %arg2[%c0_5, %c0_6] : memref<8x1xf32, #tpu.memory_space<vmem>>, vector<8x1xf32>
    tpu.vector_store %arg2[%c0_5, %c0_6], %11 {strides = array<i32>} : memref<8x1xf32, #tpu.memory_space<vmem>>, vector<8x1xf32>,
    return
  }
  func.func @transform_0(%arg0: i32) -> (i32, i32) {
    %c0_i32 = arith.constant 0 : i32
    %c0_i32_0 = arith.constant 0 : i32
    return %arg0, %c0_i32 : i32, i32
  }
  func.func @transform_1(%arg0: i32) -> (i32, i32) {
    %c0_i32 = arith.constant 0 : i32
    %c0_i32_0 = arith.constant 0 : i32
    return %arg0, %c0_i32 : i32, i32
  }
}

</mosaic_0001>

<llo_original>
// kernel: tpu_custom_call.1
$region0: #{tpu_custom_call.1}
  #allocation0 [shape = 'u32[]', space=smem, size = 0x4, offset = 0x4, fixed_abs, tag = 'smem constant byte address 0x4 - core index']
  #allocation1 [shape = 'u32[72,128]{1,0:T(1,128)}', space=vmem, size = 0x9000, scoped, tag = 'internal scratch']
  %s0 = inlined_call_operand.hbm [shape: f32[8,256], index: 0, kind: input, shape index: {}]
  %s1 = inlined_call_operand.vmem [shape: f32[8,1], index: 1, kind: output, shape index: {}]
  %s2 = sld [smem:[#allocation0]]
  $region18: #{tpu_custom_call.1} parent=0
    _
  %s4 = ssub.s32 1, %s2
  %s5 = scalar_select 0, %s4, %s2
  $region1: #{tpu_custom_call.1} parent=0
    #allocation2 [shape = 'u8[8192]{0}', space=vmem, size = 0x2000, scoped, tag = 'input window, operand 0, single buffered']
    #allocation3 [shape = 's32[1]{0}', space=sflag, size = 0x4, scoped, tag = 'scoped memory for tpu_custom_call.1']
    %6 = vsyncpa [#allocation3], 0
    // Predicated region
    $region2: #{tpu_custom_call.1} parent=1 // pred_check
      _
    $region3: #{tpu_custom_call.1} parent=1 // pred_check_branch
      %8 = sbr.rel (0) target = $region5
    $region4: #{tpu_custom_call.1} parent=1 // pred_region
      %10 = vsyncadd [#allocation3], 0
      %s12 = sshll.u32 %s0, 4
      %s13 = int_to_ptr.hbm [resolvable:$true] %s12
      %s14 = sshll.u32 [#allocation2], 4
      %s15 = int_to_ptr.vmem [resolvable:$true] %s14
      %17 = dma.hbm_to_vmem [thread:$0]  %s13, 256, %s15, [#allocation3]
    $region5: #{tpu_custom_call.1} parent=1 // pred_fallthru
      _
    // Predicated region
    $region6: #{tpu_custom_call.1} parent=1 // pred_check
      _
    $region7: #{tpu_custom_call.1} parent=1 // pred_check_branch
      %19 = sbr.rel (0) target = $region9
    $region8: #{tpu_custom_call.1} parent=1 // pred_region
      %21 = dma.done [#allocation3], 256
    $region9: #{tpu_custom_call.1} parent=1 // pred_fallthru
      _
    %v22 = vld [vmem:[#allocation2] sm:$0xff]
    %v23 = vld [vmem:[#allocation2 + $0x8] sm:$0xff]
    %v24 = vmax.f32 %v22, %v23
    %25 = vmax.xlane.f32.xlu0 %v24
    %v26 = vpop.xlane.xlu0 %25
    %v27 = vmin.f32 %v22, %v23
    %28 = vmin.xlane.f32.xlu0 %v27
    %v29 = vpop.xlane.xlu0 %28
    %v30 = vadd.f32 %v26, %v29
    %v31 = vmul.f32 %v30, 0.5
    %vm32 = vcmask 7168
    %33 = vst.msk [vmem:[%s1] sm:$0xff] %vm32, %v31
    // Predicated region
    $region10: #{tpu_custom_call.1} parent=1 // pred_check
      _
    $region11: #{tpu_custom_call.1} parent=1 // pred_check_branch
      %35 = sbr.rel (0) target = $region13
    $region12: #{tpu_custom_call.1} parent=1 // pred_region
      _
    $region13: #{tpu_custom_call.1} parent=1 // pred_fallthru
      _
    // Predicated region
    $region14: #{tpu_custom_call.1} parent=1 // pred_check
      _
    $region15: #{tpu_custom_call.1} parent=1 // pred_check_branch
      %37 = sbr.rel (0) target = $region17
    $region16: #{tpu_custom_call.1} parent=1 // pred_region
      _
    $region17: #{tpu_custom_call.1} parent=1 // pred_fallthru
      _
    %38 = vsyncpa [#allocation3], 1

</llo_original>
